<compile_context>
chip_gen: v6e
topology: v6e:2x2x1
jax: 0.10.0
libtpu: 0.0.40
codegen_flags: <defaults>
</compile_context>

<pallas_src>
from typing import Callable

import jax
import jax.numpy as jnp
from jax.experimental import pallas as pl
from jax.experimental.pallas import tpu as pltpu


# ----------------------------------------------------------------------------
# The Lambda module (parameter-free wrapper) — exact forward semantics.
# ----------------------------------------------------------------------------
class Lambda:
    """JAX/Pallas equivalent of delu.nn.Lambda: wraps any callable."""

    def __init__(self, fn: Callable):
        self.fn = fn

    def __call__(self, *args, **kwargs):
        # forward(*args, **kwargs) -> fn(*args, **kwargs)
        return self.fn(*args, **kwargs)


# ----------------------------------------------------------------------------
# Chip-aware tiling configuration.
# ----------------------------------------------------------------------------
_WIDE = 1024     # preferred lane-dense slab width
_NARROW = 128    # fallback slab width (one vreg lane row)


def _chip_config():
    """Per-device-kind (block_bytes_per_stream, vmem_limit_bytes_or_None)."""
    try:
        kind = jax.devices()[0].device_kind.lower()
    except Exception:
        kind = ""
    if "v6" in kind:
        # v6e: 128 MiB physical VMEM; 4 MiB/stream needs the scoped limit raised
        # (add3: 4 streams x 2 buffers x 4 MiB = 32 MiB == default scoped limit).
        return 4 << 20, 64 << 20
    if "v7" in kind or "7x" in kind:
        # v7x: 64 MiB physical / 32 MiB scoped per TC. 2 MiB/stream -> 16 MiB for
        # add3, and anything >2 MiB gets >=2 grid steps so both TCs are fed.
        return 2 << 20, None
    # v5e and unknown: 16 MiB scoped default -> keep 1 MiB/stream (8 MiB for add3).
    return 1 << 20, None


_BLOCK_BYTES, _VMEM_LIMIT_BYTES = _chip_config()

_CP_KWARGS = dict(dimension_semantics=("parallel",))
if _VMEM_LIMIT_BYTES is not None:
    _CP_KWARGS["vmem_limit_bytes"] = _VMEM_LIMIT_BYTES
_COMPILER_PARAMS = pltpu.CompilerParams(**_CP_KWARGS)


# ----------------------------------------------------------------------------
# Pallas elementwise kernels used as the wrapped callables.
# ----------------------------------------------------------------------------
def _square_kernel(x_ref, o_ref):
    x = x_ref[...]
    o_ref[...] = x * x


def _add3_kernel(x_ref, y_ref, z_ref, o_ref):
    o_ref[...] = x_ref[...] + y_ref[...] + z_ref[...]


# ----------------------------------------------------------------------------
# Shared launch helper: lane-dense slab planning + pallas_call.
# ----------------------------------------------------------------------------
def _launch(kernel, *arrays):
    x0 = arrays[0]
    n = x0.size
    shape, dtype = x0.shape, x0.dtype
    itemsize = jnp.dtype(dtype).itemsize
    block_elems = max(_BLOCK_BYTES // itemsize, _WIDE)

    if n % _WIDE == 0:
        width, pad_to = _WIDE, n          # wide lane-dense slab, no pad
    elif n % _NARROW == 0:
        width, pad_to = _NARROW, n        # 128-lane slab, no pad
    else:
        # Ragged sizes (e.g. 0-d scalars): pad the flat tail to one lane row.
        width = _NARROW
        pad_to = pl.cdiv(n, _NARROW) * _NARROW

    rows = pad_to // width
    block_rows = min(rows, max(8, (block_elems // width) // 8 * 8))
    grid = (pl.cdiv(rows, block_rows),)

    def to_slab(a):
        flat = a.reshape(-1)
        if pad_to != n:                   # only for ragged sizes
            flat = jnp.pad(flat, (0, pad_to - n))
        return flat.reshape(rows, width)

    slabs = [to_slab(a) for a in arrays]
    spec = pl.BlockSpec((block_rows, width), lambda i: (i, 0))

    out = pl.pallas_call(
        kernel,
        out_shape=jax.ShapeDtypeStruct((rows, width), dtype),
        grid=grid,
        in_specs=[spec] * len(slabs),
        out_specs=spec,
        compiler_params=_COMPILER_PARAMS,
    )(*slabs)

    flat = out.reshape(-1)
    if pad_to != n:
        flat = flat[:n]
    return flat.reshape(shape)


# ----------------------------------------------------------------------------
# Jitted wrapped callables (whole wrapper path under jax.jit).
# ----------------------------------------------------------------------------
@jax.jit
def pallas_square(x):
    """Elementwise square on the VPU via a Pallas kernel."""
    x = jnp.asarray(x)
    if x.size == 0:
        return x
    return _launch(_square_kernel, x)


@jax.jit
def pallas_add3(x, y, z):
    """x + y + z elementwise (same shape/dtype), via a Pallas kernel."""
    x, y, z = jnp.asarray(x), jnp.asarray(y), jnp.asarray(z)
    assert x.shape == y.shape == z.shape and x.dtype == y.dtype == z.dtype
    if x.size == 0:
        return x
    return _launch(_add3_kernel, x, y, z)


# ----------------------------------------------------------------------------
# Main: exercise Lambda with the Pallas-backed callables.
# ----------------------------------------------------------------------------
if __name__ == "__main__":
    key = jax.random.PRNGKey(0)
    k1, k2, k3 = jax.random.split(key, 3)

    # Example 1: Lambda(square) on an NCHW-shaped activation tensor.
    x = jax.random.normal(k1, (2, 4, 16, 16), dtype=jnp.float32)
    square_module = Lambda(pallas_square)
    y = jax.block_until_ready(square_module(x))
    assert y.shape == x.shape and y.dtype == x.dtype
    assert jnp.allclose(y, jnp.square(x), atol=1e-6, rtol=1e-6)

    # Docstring example: module(torch.tensor(3)) == tensor(9).
    y_scalar = jax.block_until_ready(square_module(jnp.asarray(3)))
    assert int(y_scalar) == 9

    # Example 2: Lambda(lambda x, y, z: x + y + z), mixing args and kwargs.
    a = jax.random.normal(k2, (2, 4, 16, 16), dtype=jnp.float32)
    b = jax.random.normal(k3, (2, 4, 16, 16), dtype=jnp.float32)
    add_module = Lambda(lambda x, y, z: pallas_add3(x, y, z))
    s = jax.block_until_ready(add_module(x, a, z=b))
    assert jnp.allclose(s, x + a + b, atol=1e-6, rtol=1e-6)

    # Docstring example: module(1, 2, z=3) == 6.
    s_scalar = jax.block_until_ready(add_module(1, 2, z=3))
    assert int(s_scalar) == 6

    print("KERNEL_OK")
</pallas_src>

<mosaic_0001>
module attributes {stable_mosaic.version = 11 : i64} {
  func.func @_square_kernel(%arg0: i32, %arg1: memref<2x1024xf32, #tpu.memory_space<vmem>>, %arg2: memref<2x1024xf32, #tpu.memory_space<vmem>>) attributes {dimension_semantics = [#tpu.dimension_semantics<parallel>], iteration_bounds = array<i64: 1>, scalar_prefetch = 0 : i64, scratch_operands = 0 : i64, tpu.core_type = #tpu.core_type<tc>, window_params = [{transform_indices = @transform_0, window_bounds = array<i64: 2, 1024>}, {transform_indices = @transform_1, window_bounds = array<i64: 2, 1024>}]} {
    %c0 = arith.constant 0 : index
    %c0_0 = arith.constant 0 : index
    %0 = vector.load %arg1[%c0, %c0_0] : memref<2x1024xf32, #tpu.memory_space<vmem>>, vector<2x1024xf32>
    %1 = arith.mulf %0, %0 : vector<2x1024xf32>
    %c0_1 = arith.constant 0 : index
    %c0_2 = arith.constant 0 : index
    %2 = vector.load %arg2[%c0_1, %c0_2] : memref<2x1024xf32, #tpu.memory_space<vmem>>, vector<2x1024xf32>
    tpu.vector_store %arg2[%c0_1, %c0_2], %1 {strides = array<i32>} : memref<2x1024xf32, #tpu.memory_space<vmem>>, vector<2x1024xf32>,
    return
  }
  func.func @transform_0(%arg0: i32) -> (i32, i32) {
    %c0_i32 = arith.constant 0 : i32
    %c0_i32_0 = arith.constant 0 : i32
    return %arg0, %c0_i32 : i32, i32
  }
  func.func @transform_1(%arg0: i32) -> (i32, i32) {
    %c0_i32 = arith.constant 0 : i32
    %c0_i32_0 = arith.constant 0 : i32
    return %arg0, %c0_i32 : i32, i32
  }
}

</mosaic_0001>

<llo_original>
// kernel: pallas_square.1
$region0: #{pallas_square.1}
  #allocation0 [shape = 'u32[]', space=smem, size = 0x4, offset = 0x4, fixed_abs, tag = 'smem constant byte address 0x4 - core index']
  #allocation1 [shape = 'u32[144,128]{1,0:T(1,128)}', space=vmem, size = 0x12000, scoped, tag = 'internal scratch']
  %s0 = inlined_call_operand.vmem [shape: f32[2,1024], index: 0, kind: input, shape index: {}]
  %s1 = inlined_call_operand.vmem [shape: f32[2,1024], index: 1, kind: output, shape index: {}]
  %s2 = sld [smem:[#allocation0]]
  $region14: #{pallas_square.1} parent=0
    _
  %s4 = ssub.s32 1, %s2
  %s5 = scalar_select 0, %s4, %s2
  // Predicated region
  $region2: #{pallas_square.1} parent=0 // pred_check
    _
  $region3: #{pallas_square.1} parent=0 // pred_check_branch
    %7 = sbr.rel (0) target = $region5
  $region4: #{pallas_square.1} parent=0 // pred_region
    _
  $region5: #{pallas_square.1} parent=0 // pred_fallthru
    _
  %v8 = vld [vmem:[%s0] sm:$0xff]
  %v9 = vld [vmem:[%s0 + $0x8] sm:$0xff]
  %v10 = vmul.f32 %v8, %v8
  %v11 = vmul.f32 %v9, %v9
  %12 = vst [vmem:[%s1] sm:$0xff] %v10
  %13 = vst [vmem:[%s1 + $0x8] sm:$0xff] %v11
  // Predicated region
  $region6: #{pallas_square.1} parent=0 // pred_check
    _
  $region7: #{pallas_square.1} parent=0 // pred_check_branch
    %15 = sbr.rel (0) target = $region9
  $region8: #{pallas_square.1} parent=0 // pred_region
    _
  $region9: #{pallas_square.1} parent=0 // pred_fallthru
    _
  // Predicated region
  $region10: #{pallas_square.1} parent=0 // pred_check
    _
  $region11: #{pallas_square.1} parent=0 // pred_check_branch
    %17 = sbr.rel (0) target = $region13
  $region12: #{pallas_square.1} parent=0 // pred_region
    _
  $region13: #{pallas_square.1} parent=0 // pred_fallthru
    _

</llo_original>
